<compile_context>
chip_gen: v7x
topology: tpu7x:2x2x1
jax: 0.10.0
libtpu: 0.0.40
codegen_flags: <defaults>
</compile_context>

<pallas_src>
import functools

import jax
import jax.numpy as jnp
from jax import lax
from jax.experimental import pallas as pl
from jax.experimental.pallas import tpu as pltpu

_LANE = 128
_NEG_SLOPE = 0.01  # PyTorch F.leaky_relu default


def mlp2_kernel(x_ref, w_ref, b_ref, o_ref):
    # x_ref: (TILE_B, N) VMEM    w_ref: (2, N) VMEM
    # b_ref: (2,)        SMEM    o_ref: (2, TILE_B) VMEM  (batch on lanes)
    x = x_ref[...]
    w = w_ref[...]

    # z[c, b] = sum_n w[c, n] * x[b, n]   -> (2, TILE_B), f32 accumulation.
    z = lax.dot_general(
        w, x,
        dimension_numbers=(((1,), (1,)), ((), ())),
        preferred_element_type=jnp.float32,
    )

    z0 = z[0:1, :] + b_ref[0]          # (1, TILE_B)
    z1 = z[1:2, :] + b_ref[1]          # (1, TILE_B)

    # LeakyReLU (negative_slope = 0.01)
    a0 = jnp.where(z0 >= 0, z0, _NEG_SLOPE * z0)
    a1 = jnp.where(z1 >= 0, z1, _NEG_SLOPE * z1)

    # 2-class softmax == sigmoid of the difference (pure VPU/EUP, no XLU).
    p0 = pl.reciprocal(1.0 + jnp.exp(a1 - a0), approx=True)
    p1 = 1.0 - p0

    o_ref[...] = jnp.concatenate([p0, p1], axis=0).astype(o_ref.dtype)


@functools.partial(jax.jit, static_argnames=("max_tile_b",))
def mlp2_forward(mlp_in, weight, bias, *, max_tile_b=512):
    """mlp_in: (B, N); weight: (2, N) PyTorch-style; bias: (2,). Returns (B, 2)."""
    B, N = mlp_in.shape

    # Lane-aligned batch tiling: TILE_B is a multiple of 128, padded batch a
    # multiple of TILE_B.
    b_aligned = ((B + _LANE - 1) // _LANE) * _LANE
    tile_b = min(max_tile_b, b_aligned)
    b_pad = ((b_aligned + tile_b - 1) // tile_b) * tile_b

    x = mlp_in
    if b_pad != B:
        x = jnp.pad(mlp_in, ((0, b_pad - B), (0, 0)))

    grid = (b_pad // tile_b,)

    out_t = pl.pallas_call(
        mlp2_kernel,
        out_shape=jax.ShapeDtypeStruct((2, b_pad), mlp_in.dtype),
        grid=grid,
        in_specs=[
            pl.BlockSpec((tile_b, N), lambda i: (i, 0)),          # x batch tile
            pl.BlockSpec((2, N), lambda i: (0, 0)),               # weight (resident)
            pl.BlockSpec(memory_space=pltpu.MemorySpace.SMEM),    # bias scalars
        ],
        out_specs=pl.BlockSpec((2, tile_b), lambda i: (0, i)),    # lane-dense out
        compiler_params=pltpu.CompilerParams(
            dimension_semantics=("parallel",),                    # split across TCs (v7x)
            vmem_limit_bytes=32 * 1024 * 1024,
        ),
    )(x, weight, bias)

    # Back to PyTorch's (B, 2) layout; drop batch padding. Output is tiny.
    return out_t[:, :B].T


def _ref_forward(mlp_in, weight, bias):
    z = mlp_in @ weight.T + bias
    z = jnp.where(z >= 0, z, _NEG_SLOPE * z)
    return jax.nn.softmax(z, axis=1)


if __name__ == "__main__":
    key = jax.random.PRNGKey(0)
    k_x, k_x2, k_w, k_b = jax.random.split(key, 4)

    n_mlp = 32
    # Deterministic parameter init mimicking PyTorch Linear: U(-1/sqrt(N), 1/sqrt(N))
    bound = 1.0 / (n_mlp ** 0.5)
    weight = jax.random.uniform(k_w, (2, n_mlp), jnp.float32, -bound, bound)
    bias = jax.random.uniform(k_b, (2,), jnp.float32, -bound, bound)

    # Small case (single grid step, needs padding) and a larger case that
    # exercises the batch grid (1000 -> padded 1024, two 512-wide tiles).
    for B, kx in ((8, k_x), (1000, k_x2)):
        mlp_in = jax.random.normal(kx, (B, n_mlp), jnp.float32)

        out = jax.block_until_ready(mlp2_forward(mlp_in, weight, bias))
        ref = _ref_forward(mlp_in, weight, bias)

        assert out.shape == (B, 2)
        assert jnp.allclose(out, ref, atol=2e-3, rtol=2e-3), "mismatch vs reference"
        assert jnp.allclose(jnp.sum(out, axis=1), 1.0, atol=1e-5), "softmax rows must sum to 1"

    print("KERNEL_OK")
</pallas_src>

<mosaic_0001>
module attributes {stable_mosaic.version = 11 : i64} {
  func.func @mlp2_kernel(%arg0: i32, %arg1: memref<128x32xf32, #tpu.memory_space<vmem>>, %arg2: memref<2x32xf32, #tpu.memory_space<vmem>>, %arg3: memref<2xf32, #tpu.memory_space<smem>>, %arg4: memref<2x128xf32, #tpu.memory_space<vmem>>) attributes {dimension_semantics = [#tpu.dimension_semantics<parallel>], iteration_bounds = array<i64: 1>, scalar_prefetch = 0 : i64, scratch_operands = 0 : i64, tpu.core_type = #tpu.core_type<tc>, window_params = [{transform_indices = @transform_0, window_bounds = array<i64: 128, 32>}, {pipeline_mode = #tpu.pipeline_mode<synchronous>, transform_indices = @transform_1, window_bounds = array<i64: 2, 32>}, {transform_indices = @transform_2, window_bounds = array<i64: 2>}, {transform_indices = @transform_3, window_bounds = array<i64: 2, 128>}]} {
    %c0 = arith.constant 0 : index
    %c0_0 = arith.constant 0 : index
    %0 = vector.load %arg1[%c0, %c0_0] : memref<128x32xf32, #tpu.memory_space<vmem>>, vector<128x32xf32>
    %c0_1 = arith.constant 0 : index
    %c0_2 = arith.constant 0 : index
    %1 = vector.load %arg2[%c0_1, %c0_2] : memref<2x32xf32, #tpu.memory_space<vmem>>, vector<2x32xf32>
    %cst = arith.constant dense<0.000000e+00> : vector<2x128xf32>
    %2 = tpu.matmul %1, %0, %cst {dimension_numbers = #tpu.dot_dimension_numbers<[1], [1], [0], [0], [0, 0, 1, 0], [], []>} : vector<2x32xf32>, vector<128x32xf32>, vector<2x128xf32> -> vector<2x128xf32>
    %3 = vector.extract_strided_slice %2 {offsets = [0, 0], sizes = [1, 128], strides = [1, 1]} : vector<2x128xf32> to vector<1x128xf32>
    %c0_3 = arith.constant 0 : index
    %4 = memref.load %arg3[%c0_3] : memref<2xf32, #tpu.memory_space<smem>>
    %5 = vector.broadcast %4 : f32 to vector<1x128xf32>
    %6 = arith.addf %3, %5 : vector<1x128xf32>
    %7 = vector.extract_strided_slice %2 {offsets = [1, 0], sizes = [1, 128], strides = [1, 1]} : vector<2x128xf32> to vector<1x128xf32>
    %c1 = arith.constant 1 : index
    %8 = memref.load %arg3[%c1] : memref<2xf32, #tpu.memory_space<smem>>
    %9 = vector.broadcast %8 : f32 to vector<1x128xf32>
    %10 = arith.addf %7, %9 : vector<1x128xf32>
    %cst_4 = arith.constant 0.000000e+00 : f32
    %11 = vector.broadcast %cst_4 : f32 to vector<1x128xf32>
    %12 = arith.cmpf oge, %6, %11 : vector<1x128xf32>
    %cst_5 = arith.constant 0.00999999977 : f32
    %13 = vector.broadcast %cst_5 : f32 to vector<1x128xf32>
    %14 = arith.mulf %13, %6 : vector<1x128xf32>
    %15 = arith.select %12, %6, %14 : vector<1x128xi1>, vector<1x128xf32>
    %cst_6 = arith.constant 0.000000e+00 : f32
    %16 = vector.broadcast %cst_6 : f32 to vector<1x128xf32>
    %17 = arith.cmpf oge, %10, %16 : vector<1x128xf32>
    %cst_7 = arith.constant 0.00999999977 : f32
    %18 = vector.broadcast %cst_7 : f32 to vector<1x128xf32>
    %19 = arith.mulf %18, %10 : vector<1x128xf32>
    %20 = arith.select %17, %10, %19 : vector<1x128xi1>, vector<1x128xf32>
    %21 = arith.subf %20, %15 : vector<1x128xf32>
    %22 = math.exp %21 : vector<1x128xf32>
    %cst_8 = arith.constant 1.000000e+00 : f32
    %23 = vector.broadcast %cst_8 : f32 to vector<1x128xf32>
    %24 = arith.addf %23, %22 : vector<1x128xf32>
    %25 = tpu.reciprocal %24 {approx = true} : vector<1x128xf32> -> vector<1x128xf32>
    %cst_9 = arith.constant 1.000000e+00 : f32
    %26 = vector.broadcast %cst_9 : f32 to vector<1x128xf32>
    %27 = arith.subf %26, %25 : vector<1x128xf32>
    %28 = tpu.concatenate %25, %27 in 0 : vector<1x128xf32>, vector<1x128xf32> -> vector<2x128xf32>
    %c0_10 = arith.constant 0 : index
    %c0_11 = arith.constant 0 : index
    %29 = vector.load %arg4[%c0_10, %c0_11] : memref<2x128xf32, #tpu.memory_space<vmem>>, vector<2x128xf32>
    tpu.vector_store %arg4[%c0_10, %c0_11], %28 {strides = array<i32>} : memref<2x128xf32, #tpu.memory_space<vmem>>, vector<2x128xf32>,
    return
  }
  func.func @transform_0(%arg0: i32) -> (i32, i32) {
    %c0_i32 = arith.constant 0 : i32
    %c0_i32_0 = arith.constant 0 : i32
    return %arg0, %c0_i32 : i32, i32
  }
  func.func @transform_1(%arg0: i32) -> (i32, i32) {
    %c0_i32 = arith.constant 0 : i32
    %c0_i32_0 = arith.constant 0 : i32
    %c0_i32_1 = arith.constant 0 : i32
    return %c0_i32, %c0_i32_0 : i32, i32
  }
  func.func @transform_2(%arg0: i32) -> i32 {
    %c0_i32 = arith.constant 0 : i32
    %c0_i32_0 = arith.constant 0 : i32
    return %c0_i32 : i32
  }
  func.func @transform_3(%arg0: i32) -> (i32, i32) {
    %c0_i32 = arith.constant 0 : i32
    %c0_i32_0 = arith.constant 0 : i32
    return %c0_i32, %arg0 : i32, i32
  }
}

</mosaic_0001>

<llo_original>
// kernel: mlp2_forward.1
$region0: #{mlp2_forward.1}
  #allocation0 [shape = 'u32[]', space=smem, size = 0x4, offset = 0x4, fixed_abs, tag = 'smem constant byte address 0x4 - core index']
  #allocation1 [shape = 'u32[144,128]{1,0:T(1,128)}', space=vmem, size = 0x12000, scoped, tag = 'internal scratch']
  %s0 = inlined_call_operand.vmem [shape: f32[128,32], index: 0, kind: input, shape index: {}]
  %s1 = inlined_call_operand.vmem [shape: f32[2,32], index: 1, kind: input, shape index: {}]
  %s2 = inlined_call_operand.vmem [shape: f32[2], index: 2, kind: input, shape index: {}]
  %s3 = inlined_call_operand.vmem [shape: f32[2,128], index: 3, kind: output, shape index: {}]
  %s4 = sld [smem:[#allocation0]]
  $region26: #{mlp2_forward.1} parent=0
    _
  %s6 = ssub.s32 1, %s4
  %s7 = scalar_select 0, %s6, %s4
  $region1: #{mlp2_forward.1} parent=0
    #allocation2 [shape = 'u8[512]{0}', space=smem, size = 0x200, scoped, tag = 'input window, operand 2, single buffered']
    #allocation3 [shape = 's32[1]{0}', space=sflag, size = 0x4, scoped, tag = 'scoped memory for mlp2_forward.1']
    %8 = vsyncpa [#allocation3], 0
    // Predicated region
    $region2: #{mlp2_forward.1} parent=1 // pred_check
      _
    $region3: #{mlp2_forward.1} parent=1 // pred_check_branch
      %10 = sbr.rel (0) target = $region5
    $region4: #{mlp2_forward.1} parent=1 // pred_region
      _
    $region5: #{mlp2_forward.1} parent=1 // pred_fallthru
      _
    // Predicated region
    $region6: #{mlp2_forward.1} parent=1 // pred_check
      _
    $region7: #{mlp2_forward.1} parent=1 // pred_check_branch
      %12 = sbr.rel (0) target = $region9
    $region8: #{mlp2_forward.1} parent=1 // pred_region
      _
    $region9: #{mlp2_forward.1} parent=1 // pred_fallthru
      _
    // Predicated region
    $region10: #{mlp2_forward.1} parent=1 // pred_check
      _
    $region11: #{mlp2_forward.1} parent=1 // pred_check_branch
      %14 = sbr.rel (0) target = $region13
    $region12: #{mlp2_forward.1} parent=1 // pred_region
      %s16 = ssub.s32 16, 16
      %17 = vsyncadd [#allocation3], %s16
      %s19 = sshll.u32 %s2, 4
      %s20 = int_to_ptr.vmem [resolvable:$true] %s19
      %22 = dma.vmem_to_smem %s20, 16, [#allocation2], [#allocation3]
    $region13: #{mlp2_forward.1} parent=1 // pred_fallthru
      _
    // Predicated region
    $region14: #{mlp2_forward.1} parent=1 // pred_check
      _
    $region15: #{mlp2_forward.1} parent=1 // pred_check_branch
      %24 = sbr.rel (0) target = $region17
    $region16: #{mlp2_forward.1} parent=1 // pred_region
      %25 = dma.done [#allocation3], 16
    $region17: #{mlp2_forward.1} parent=1 // pred_fallthru
      _
    %26 = sfence
    %v27 = vld [vmem:[%s0] sm:$0xff]
    %v28 = vld [vmem:[%s0 + $0x8] sm:$0xff]
    %v29 = vld [vmem:[%s0 + $0x10] sm:$0xff]
    %v30 = vld [vmem:[%s0 + $0x18] sm:$0xff]
    %v31 = vld [vmem:[%s0 + $0x20] sm:$0xff]
    %v32 = vld [vmem:[%s0 + $0x28] sm:$0xff]
    %v33 = vld [vmem:[%s0 + $0x30] sm:$0xff]
    %v34 = vld [vmem:[%s0 + $0x38] sm:$0xff]
    %v35 = vld [vmem:[%s0 + $0x40] sm:$0xff]
    %v36 = vld [vmem:[%s0 + $0x48] sm:$0xff]
    %v37 = vld [vmem:[%s0 + $0x50] sm:$0xff]
    %v38 = vld [vmem:[%s0 + $0x58] sm:$0xff]
    %v39 = vld [vmem:[%s0 + $0x60] sm:$0xff]
    %v40 = vld [vmem:[%s0 + $0x68] sm:$0xff]
    %v41 = vld [vmem:[%s0 + $0x70] sm:$0xff]
    %v42 = vld [vmem:[%s0 + $0x78] sm:$0xff]
    %v43 = vld [vmem:[%s1] sm:$0x3]
    %vm44 = vcmask 261120
    %v46 = vsel %vm44, %v43, 0
    %v49 = vsel %vm44, %v27, 0
    %v52 = vsel %vm44, %v28, 0
    %v55 = vsel %vm44, %v29, 0
    %v58 = vsel %vm44, %v30, 0
    %v61 = vsel %vm44, %v31, 0
    %v64 = vsel %vm44, %v32, 0
    %v67 = vsel %vm44, %v33, 0
    %v70 = vsel %vm44, %v34, 0
    %v73 = vsel %vm44, %v35, 0
    %v76 = vsel %vm44, %v36, 0
    %v79 = vsel %vm44, %v37, 0
    %v82 = vsel %vm44, %v38, 0
    %v85 = vsel %vm44, %v39, 0
    %v88 = vsel %vm44, %v40, 0
    %v91 = vsel %vm44, %v41, 0
    %v94 = vsel %vm44, %v42, 0
    %96 = vmatprep.subr.mxu0 0.0
    %97 = vmatpush1.xpose.msra.mxu0 %v49
    %98 = vmatprep.subr.mxu0 0.0
    %99 = vmatpush1.xpose.msra.mxu0 %v52
    %100 = vmatprep.subr.mxu0 0.0
    %101 = vmatpush1.xpose.msra.mxu0 %v55
    %102 = vmatprep.subr.mxu0 0.0
    %103 = vmatpush1.xpose.msra.mxu0 %v58
    %104 = vmatprep.subr.mxu0 0.0
    %105 = vmatpush1.xpose.msra.mxu0 %v61
    %106 = vmatprep.subr.mxu0 0.0
    %107 = vmatpush1.xpose.msra.mxu0 %v64
    %108 = vmatprep.subr.mxu0 0.0
    %109 = vmatpush1.xpose.msra.mxu0 %v67
    %110 = vmatprep.subr.mxu0 0.0
    %111 = vmatpush1.xpose.msra.mxu0 %v70
    %112 = vmatprep.subr.mxu0 0.0
    %113 = vmatpush1.xpose.msra.mxu0 %v73
    %114 = vmatprep.subr.mxu0 0.0
    %115 = vmatpush1.xpose.msra.mxu0 %v76
    %116 = vmatprep.subr.mxu0 0.0
    %117 = vmatpush1.xpose.msra.mxu0 %v79
    %118 = vmatprep.subr.mxu0 0.0
    %119 = vmatpush1.xpose.msra.mxu0 %v82
    %120 = vmatprep.subr.mxu0 0.0
    %121 = vmatpush1.xpose.msra.mxu0 %v85
    %122 = vmatprep.subr.mxu0 0.0
    %123 = vmatpush1.xpose.msra.mxu0 %v88
    %124 = vmatprep.subr.mxu0 0.0
    %125 = vmatpush1.xpose.msra.mxu0 %v91
    %126 = vmatprep.subr.mxu0 0.0
    %127 = vmatpush1.xpose.msra.mxu0 %v94
    %128 = vmatprep.subr.mxu0 0.0
    %129 = vmatpush1.xpose.msra.mxu0 0.0
    %130 = vmatprep.subr.mxu0 0.0
    %131 = vmatpush1.xpose.msra.mxu0 0.0
    %132 = vmatprep.subr.mxu0 0.0
    %133 = vmatpush1.xpose.msra.mxu0 0.0
    %134 = vmatprep.subr.mxu0 0.0
    %135 = vmatpush1.xpose.msra.mxu0 0.0
    %136 = vmatprep.subr.mxu0 0.0
    %137 = vmatpush1.xpose.msra.mxu0 0.0
    %138 = vmatprep.subr.mxu0 0.0
    %139 = vmatpush1.xpose.msra.mxu0 0.0
    %140 = vmatprep.subr.mxu0 0.0
    %141 = vmatpush1.xpose.msra.mxu0 0.0
    %142 = vmatprep.subr.mxu0 0.0
    %143 = vmatpush1.xpose.msra.mxu0 0.0
    %144 = vmatprep.subr.mxu0 0.0
    %145 = vmatpush1.xpose.msra.mxu0 0.0
    %146 = vmatprep.subr.mxu0 0.0
    %147 = vmatpush1.xpose.msra.mxu0 0.0
    %148 = vmatprep.subr.mxu0 0.0
    %149 = vmatpush1.xpose.msra.mxu0 0.0
    %150 = vmatprep.subr.mxu0 0.0
    %151 = vmatpush1.xpose.msra.mxu0 0.0
    %152 = vmatprep.subr.mxu0 0.0
    %153 = vmatpush1.xpose.msra.mxu0 0.0
    %154 = vmatprep.subr.mxu0 0.0
    %155 = vmatpush1.xpose.msra.mxu0 0.0
    %156 = vmatprep.subr.mxu0 0.0
    %157 = vmatpush1.xpose.msra.mxu0 0.0
    %158 = vmatprep.subr.mxu0 0.0
    %159 = vmatpush1.xpose.msra.mxu0 0.0
    %160 = vmatprep.mubr.f32.mxu0 0.0
    %161 = vmatmul.mubr.f32.gmra.mrb[0].mxu0 %v46
    %v162 = vpop.f32.mrb[0].mxu0
    %v163 = vadd.f32 0.0, %v162
    %v164 = vpop.f32.mrb[0].mxu0
    %165 = vdwg.mxu0
    %s166 = sld [smem:[#allocation2]]
    %v167 = vstv %s166
    %v168 = vadd.f32 %v163, %v167
    %s169 = sld [smem:[#allocation2 + $0x1]]
    %v170 = vstv %s169
    %v171 = vadd.f32 %v163, %v170
    %vm172 = vcmp.ge.f32.partialorder %v168, 0.0
    %v173 = vmul.f32 %v168, 0.01
    %v174 = vsel %vm172, %v168, %v173
    %vm175 = vcmp.ge.f32.partialorder %v171, 0.0
    %v176 = vmul.f32 %v171, 0.01
    %v177 = vsel %vm175, %v171, %v176
    %v179 = vrot.slane %v174, 7
    %v181 = vsub.f32 %v177, %v179
    %v182 = vmul.f32 %v181, 1.442695
    %v183 = vpow.pop %v182
    %v184 = vadd.f32 %v183, 1.0
    %v185 = vrcp.pop %v184
    %v186 = vsub.f32 1.0, %v185
    %v188 = vrot.slane %v185, 1
    %vm190 = vcmask 1040384
    %v191 = vsel %vm190, %v188, %v186
    %192 = vst [vmem:[%s3] sm:$0x3] %v191
    // Predicated region
    $region18: #{mlp2_forward.1} parent=1 // pred_check
      _
    $region19: #{mlp2_forward.1} parent=1 // pred_check_branch
      %194 = sbr.rel (0) target = $region21
    $region20: #{mlp2_forward.1} parent=1 // pred_region
      _
    $region21: #{mlp2_forward.1} parent=1 // pred_fallthru
      _
    // Predicated region
    $region22: #{mlp2_forward.1} parent=1 // pred_check
      _
    $region23: #{mlp2_forward.1} parent=1 // pred_check_branch
      %196 = sbr.rel (0) target = $region25
    $region24: #{mlp2_forward.1} parent=1 // pred_region
      _
    $region25: #{mlp2_forward.1} parent=1 // pred_fallthru
      _
    %197 = vsyncpa [#allocation3], 1

</llo_original>
